<compile_context>
chip_gen: v7x
topology: tpu7x:2x2x1
jax: 0.10.0
libtpu: 0.0.40
codegen_flags: <defaults>
</compile_context>

<pallas_src>
import jax
import jax.numpy as jnp
from jax.experimental import pallas as pl
from jax.experimental.pallas import tpu as pltpu


def _quantize_kernel(x_ref, em2_ref, et_ref, e2_ref, q_ref, idx_ref):
    # x_ref   : (D, tn) pixel tile, channel-major (pixels on lanes)
    # em2_ref : (K, D)  -2 * codebook (resident; -2 pre-folded in the wrapper)
    # et_ref  : (D, K)  codebook transposed (resident; gather matmul operand)
    # e2_ref  : (K, 1)  ||e_k||^2 in f32 (hoisted out of the grid loop)

    # (K, tn) surrogate distance: (-2 E) @ X on the MXU (f32 acc) + ||E||^2.
    ex_m2 = jnp.dot(em2_ref[...], x_ref[...], preferred_element_type=jnp.float32)
    score = ex_m2 + e2_ref[...]                                  # ||e||^2 - 2 e.x

    K, tn = score.shape

    # first-minimum argmin over the K (sublane) axis -- matches torch.argmin.
    min_s = jnp.min(score, axis=0, keepdims=True)                # (1, tn)
    k_iota = jax.lax.broadcasted_iota(jnp.int32, (K, tn), 0)     # (K, tn)
    idx = jnp.min(jnp.where(score == min_s, k_iota, K),
                  axis=0, keepdims=True)                         # (1, tn)

    # codebook gather as one-hot MXU matmul: (D, K) @ (K, tn) -> (D, tn).
    # one-hot in the codebook dtype (exact for 0/1), f32 accumulation.
    onehot = (k_iota == idx).astype(et_ref.dtype)                # (K, tn)
    quant = jnp.dot(et_ref[...], onehot, preferred_element_type=jnp.float32)

    q_ref[...] = quant.astype(q_ref.dtype)                       # (D, tn) lane-dense
    idx_ref[...] = idx[None].astype(jnp.int32)                   # (1, 1, tn) lane-dense


def _ceil_to(x, m):
    return -(-x // m) * m


def _vmem_estimate_bytes(tn, K, D, x_item, e_item):
    """Rough per-kernel VMEM footprint used for lane-tile sizing."""
    io_tiles = 2 * 2 * D * tn * x_item        # x + q tiles, double-buffered
    idx_tile = 2 * tn * 4                     # (1, 1, tn) int32, double-buffered
    codebook = 2 * K * D * e_item + K * 4     # e_m2 + E^T + ||E||^2 (single-buffered)
    temps = 5 * K * tn * 4                    # score / iota / where / onehot temps
    return io_tiles + idx_tile + codebook + temps


def _pick_lane_tile(HW, b, K, D, x_item, e_item, budget_bytes):
    """Largest lane tile (multiple of 128) that fits the VMEM budget and keeps
    at least ~4 grid steps so both v7x TensorCores get work."""
    hw128 = _ceil_to(HW, 128)
    cands = [c for c in (2048, 1024, 512, 256, 128) if c <= hw128] or [128]
    for c in cands:
        fits = _vmem_estimate_bytes(c, K, D, x_item, e_item) <= budget_bytes
        enough_steps = b * pl.cdiv(HW, c) >= 4
        if fits and (enough_steps or c == cands[-1]):
            return c
    return cands[-1]


def quantize_forward(z, embeddings, *, tn=None, vmem_budget_bytes=40 * 2**20):
    """Forward pass of Quantize (inference semantics of the returned values).

    z          : (b, c, h, w) NCHW activations with c == code_dim
    embeddings : (size, code_dim) codebook
    returns (quantized_nchw, straight_through_nchw, encoding_indices_bhw)
    """
    b, c, h, w = z.shape
    K, D = embeddings.shape
    if c != D:
        raise ValueError("channel dim must equal code_dim")

    x_item = jnp.dtype(z.dtype).itemsize
    e_item = jnp.dtype(embeddings.dtype).itemsize
    # sublane packing of the (D, tn) pixel/output tiles: 8 (f32) / 16 (bf16) rows
    sub_mult = 8 * max(1, 4 // x_item)
    if b > 1 and D % sub_mult != 0:
        raise ValueError(
            f"code_dim must be a multiple of {sub_mult} for {jnp.dtype(z.dtype)} "
            f"sublane tiling when batch > 1 (got {D})")

    HW = h * w
    if tn is None:
        tn = _pick_lane_tile(HW, b, K, D, x_item, e_item, vmem_budget_bytes)
    tn = max(128, _ceil_to(tn, 128))

    # NCHW -> (b*D, HW): pure reshape of the same HBM bytes (no pad/copy;
    # a non-divisible trailing lane block is handled by Pallas and the
    # out-of-range columns are never written back).
    x = z.reshape(b * D, HW)

    # hoisted, tiny, grid-resident codebook tensors
    emb_f32 = embeddings.astype(jnp.float32)
    e_m2 = (embeddings * (-2)).astype(embeddings.dtype)       # -2 pre-folded (MXU lhs)
    et = embeddings.T                                         # (D, K) gather operand
    e2 = jnp.sum(emb_f32 * emb_f32, axis=-1, keepdims=True)   # (K, 1) ||e_k||^2, f32

    grid = (b, pl.cdiv(HW, tn))
    est = _vmem_estimate_bytes(tn, K, D, x_item, e_item)
    vmem_limit = int(min(64 * 2**20, max(32 * 2**20, 2 * est)))

    def _run(single_buffer_codebook):
        cb_mode = {}
        if single_buffer_codebook:
            # Resident codebook blocks (constant index_map): single buffer to
            # halve their VMEM footprint (matters for large K*D on v7x 64 MiB).
            cb_mode = dict(pipeline_mode=pl.Buffered(1))
        return pl.pallas_call(
            _quantize_kernel,
            out_shape=(
                jax.ShapeDtypeStruct((b * D, HW), z.dtype),
                jax.ShapeDtypeStruct((b, 1, HW), jnp.int32),
            ),
            grid_spec=pltpu.PrefetchScalarGridSpec(
                num_scalar_prefetch=0,
                grid=grid,
                in_specs=[
                    pl.BlockSpec((D, tn), lambda i, j: (i, j)),             # pixel tile
                    pl.BlockSpec((K, D), lambda i, j: (0, 0), **cb_mode),   # -2 * E
                    pl.BlockSpec((D, K), lambda i, j: (0, 0), **cb_mode),   # E^T
                    pl.BlockSpec((K, 1), lambda i, j: (0, 0), **cb_mode),   # ||E||^2
                ],
                out_specs=(
                    pl.BlockSpec((D, tn), lambda i, j: (i, j)),             # quantized (NCHW view)
                    pl.BlockSpec((1, 1, tn), lambda i, j: (i, 0, j)),       # indices (lane-dense)
                ),
            ),
            compiler_params=pltpu.CompilerParams(
                dimension_semantics=("parallel", "parallel"),
                vmem_limit_bytes=vmem_limit,
            ),
        )(x, e_m2, et, e2)

    try:
        q_flat, idx_flat = _run(single_buffer_codebook=True)
    except Exception:
        # pl.Buffered(1) (single-buffered resident blocks) unsupported on this
        # jax version/backend -- fall back to default double-buffering.
        q_flat, idx_flat = _run(single_buffer_codebook=False)

    quantized = q_flat.reshape(b, D, h, w).astype(z.dtype)
    encoding_indices = idx_flat[:, 0, :].reshape(b, h, w)

    # straight-through estimator: value == quantized, gradient flows to z
    straight_through = z + jax.lax.stop_gradient(quantized - z)

    # TODO(synk): training-mode EMA buffer updates (N, z_avg, embeddings copy_)
    # are stateful module side effects that do not affect the returned values;
    # they are not implemented in this inference kernel.
    return quantized, straight_through, encoding_indices


if __name__ == "__main__":
    # small shapes consistent with the module: b=2, code_dim=8, h=w=16, size=32
    b, code_dim, h, w = 2, 8, 16, 16
    size = 32

    key = jax.random.PRNGKey(0)
    k_z, k_emb = jax.random.split(key)
    z = jax.random.normal(k_z, (b, code_dim, h, w), dtype=jnp.float32)
    embeddings = jax.random.normal(k_emb, (size, code_dim), dtype=jnp.float32)

    quantized, st, indices = quantize_forward(z, embeddings)
    jax.block_until_ready((quantized, st, indices))

    # lightweight reference check in plain JAX
    flat = jnp.transpose(z, (0, 2, 3, 1)).reshape(-1, code_dim)
    dist_ref = jnp.sum((flat[:, None, :] - embeddings[None, :, :]) ** 2, axis=-1)
    idx_ref = jnp.argmin(dist_ref, axis=-1)
    quant_ref = jnp.transpose(embeddings[idx_ref].reshape(b, h, w, code_dim),
                              (0, 3, 1, 2))
    assert jnp.array_equal(indices.reshape(-1), idx_ref)
    assert jnp.allclose(quantized, quant_ref, atol=1e-5)
    assert jnp.allclose(st, quant_ref, atol=1e-5)

    print("KERNEL_OK")
</pallas_src>

<mosaic_0001>
module attributes {stable_mosaic.version = 11 : i64} {
  func.func @_quantize_kernel(%arg0: i32, %arg1: i32, %arg2: memref<8x128xf32, #tpu.memory_space<vmem>>, %arg3: memref<32x8xf32, #tpu.memory_space<vmem>>, %arg4: memref<8x32xf32, #tpu.memory_space<vmem>>, %arg5: memref<32x1xf32, #tpu.memory_space<vmem>>, %arg6: memref<8x128xf32, #tpu.memory_space<vmem>>, %arg7: memref<1x1x128xi32, #tpu.memory_space<vmem>>) attributes {dimension_semantics = [#tpu.dimension_semantics<parallel>, #tpu.dimension_semantics<parallel>], iteration_bounds = array<i64: 2, 2>, scalar_prefetch = 0 : i64, scratch_operands = 0 : i64, tpu.core_type = #tpu.core_type<tc>, window_params = [{transform_indices = @transform_0, window_bounds = array<i64: 8, 128>}, {pipeline_mode = #tpu.pipeline_mode<synchronous>, transform_indices = @transform_1, window_bounds = array<i64: 32, 8>}, {pipeline_mode = #tpu.pipeline_mode<synchronous>, transform_indices = @transform_2, window_bounds = array<i64: 8, 32>}, {pipeline_mode = #tpu.pipeline_mode<synchronous>, transform_indices = @transform_3, window_bounds = array<i64: 32, 1>}, {transform_indices = @transform_4, window_bounds = array<i64: 8, 128>}, {transform_indices = @transform_5, window_bounds = array<i64: 1, 1, 128>}]} {
    %c0 = arith.constant 0 : index
    %c0_0 = arith.constant 0 : index
    %0 = vector.load %arg3[%c0, %c0_0] : memref<32x8xf32, #tpu.memory_space<vmem>>, vector<32x8xf32>
    %c0_1 = arith.constant 0 : index
    %c0_2 = arith.constant 0 : index
    %1 = vector.load %arg2[%c0_1, %c0_2] : memref<8x128xf32, #tpu.memory_space<vmem>>, vector<8x128xf32>
    %cst = arith.constant dense<0.000000e+00> : vector<32x128xf32>
    %2 = tpu.matmul %0, %1, %cst {dimension_numbers = #tpu.dot_dimension_numbers<[1], [0], [0], [1], [0, 0, 1, 1], [], []>} : vector<32x8xf32>, vector<8x128xf32>, vector<32x128xf32> -> vector<32x128xf32>
    %c0_3 = arith.constant 0 : index
    %c0_4 = arith.constant 0 : index
    %3 = vector.load %arg5[%c0_3, %c0_4] : memref<32x1xf32, #tpu.memory_space<vmem>>, vector<32x1xf32>
    %4 = vector.broadcast %3 : vector<32x1xf32> to vector<32x128xf32>
    %5 = arith.addf %2, %4 : vector<32x128xf32>
    %cst_5 = arith.constant dense<0x7F800000> : vector<128xf32>
    %6 = vector.multi_reduction <minimumf>, %5, %cst_5 [0] : vector<32x128xf32> to vector<128xf32>
    %7 = vector.shape_cast %6 : vector<128xf32> to vector<1x128xf32>
    %8 = tpu.iota {dimensions = array<i32: 0>} : vector<32x128xi32>
    %9 = vector.broadcast %7 : vector<1x128xf32> to vector<32x128xf32>
    %10 = arith.cmpf oeq, %5, %9 : vector<32x128xf32>
    %c32_i32 = arith.constant 32 : i32
    %11 = vector.broadcast %c32_i32 : i32 to vector<32x128xi32>
    %12 = arith.select %10, %8, %11 : vector<32x128xi1>, vector<32x128xi32>
    %cst_6 = arith.constant dense<2147483647> : vector<128xi32>
    %13 = vector.multi_reduction <minsi>, %12, %cst_6 [0] : vector<32x128xi32> to vector<128xi32>
    %14 = vector.shape_cast %13 : vector<128xi32> to vector<1x128xi32>
    %15 = vector.broadcast %14 : vector<1x128xi32> to vector<32x128xi32>
    %16 = arith.cmpi eq, %8, %15 : vector<32x128xi32>
    %17 = arith.extui %16 : vector<32x128xi1> to vector<32x128xi32>
    %18 = arith.sitofp %17 : vector<32x128xi32> to vector<32x128xf32>
    %c0_7 = arith.constant 0 : index
    %c0_8 = arith.constant 0 : index
    %19 = vector.load %arg4[%c0_7, %c0_8] : memref<8x32xf32, #tpu.memory_space<vmem>>, vector<8x32xf32>
    %cst_9 = arith.constant dense<0.000000e+00> : vector<8x128xf32>
    %20 = tpu.matmul %19, %18, %cst_9 {dimension_numbers = #tpu.dot_dimension_numbers<[1], [0], [0], [1], [0, 0, 1, 1], [], []>} : vector<8x32xf32>, vector<32x128xf32>, vector<8x128xf32> -> vector<8x128xf32>
    %c0_10 = arith.constant 0 : index
    %c0_11 = arith.constant 0 : index
    %21 = vector.load %arg6[%c0_10, %c0_11] : memref<8x128xf32, #tpu.memory_space<vmem>>, vector<8x128xf32>
    tpu.vector_store %arg6[%c0_10, %c0_11], %20 {strides = array<i32>} : memref<8x128xf32, #tpu.memory_space<vmem>>, vector<8x128xf32>,
    %22 = vector.shape_cast %14 : vector<1x128xi32> to vector<1x1x128xi32>
    %c0_12 = arith.constant 0 : index
    %c0_13 = arith.constant 0 : index
    %c0_14 = arith.constant 0 : index
    %23 = vector.load %arg7[%c0_12, %c0_13, %c0_14] : memref<1x1x128xi32, #tpu.memory_space<vmem>>, vector<1x1x128xi32>
    tpu.vector_store %arg7[%c0_12, %c0_13, %c0_14], %22 {strides = array<i32>} : memref<1x1x128xi32, #tpu.memory_space<vmem>>, vector<1x1x128xi32>,
    return
  }
  func.func @transform_0(%arg0: i32, %arg1: i32) -> (i32, i32) {
    %c0_i32 = arith.constant 0 : i32
    return %arg0, %arg1 : i32, i32
  }
  func.func @transform_1(%arg0: i32, %arg1: i32) -> (i32, i32) {
    %c0_i32 = arith.constant 0 : i32
    %c0_i32_0 = arith.constant 0 : i32
    %c0_i32_1 = arith.constant 0 : i32
    return %c0_i32, %c0_i32_0 : i32, i32
  }
  func.func @transform_2(%arg0: i32, %arg1: i32) -> (i32, i32) {
    %c0_i32 = arith.constant 0 : i32
    %c0_i32_0 = arith.constant 0 : i32
    %c0_i32_1 = arith.constant 0 : i32
    return %c0_i32, %c0_i32_0 : i32, i32
  }
  func.func @transform_3(%arg0: i32, %arg1: i32) -> (i32, i32) {
    %c0_i32 = arith.constant 0 : i32
    %c0_i32_0 = arith.constant 0 : i32
    %c0_i32_1 = arith.constant 0 : i32
    return %c0_i32, %c0_i32_0 : i32, i32
  }
  func.func @transform_4(%arg0: i32, %arg1: i32) -> (i32, i32) {
    %c0_i32 = arith.constant 0 : i32
    return %arg0, %arg1 : i32, i32
  }
  func.func @transform_5(%arg0: i32, %arg1: i32) -> (i32, i32, i32) {
    %c0_i32 = arith.constant 0 : i32
    %c0_i32_0 = arith.constant 0 : i32
    return %arg0, %c0_i32, %arg1 : i32, i32, i32
  }
}

module attributes {stable_mosaic.version = 11 : i64} {
  func.func @_quantize_kernel(%arg0: i32, %arg1: i32, %arg2: memref<8x128xf32, #tpu.memory_space<vmem>>, %arg3: memref<32x8xf32, #tpu.memory_space<vmem>>, %arg4: memref<8x32xf32, #tpu.memory_space<vmem>>, %arg5: memref<32x1xf32, #tpu.memory_space<vmem>>, %arg6: memref<8x128xf32, #tpu.memory_space<vmem>>, %arg7: memref<1x1x128xi32, #tpu.memory_space<vmem>>) attributes {dimension_semantics = [#tpu.dimension_semantics<parallel>, #tpu.dimension_semantics<parallel>], iteration_bounds = array<i64: 2, 2>, scalar_prefetch = 0 : i64, scratch_operands = 0 : i64, tpu.core_type = #tpu.core_type<tc>, window_params = [{transform_indices = @transform_0, window_bounds = array<i64: 8, 128>}, {pipeline_mode = #tpu.pipeline_mode<synchronous>, transform_indices = @transform_1, window_bounds = array<i64: 32, 8>}, {pipeline_mode = #tpu.pipeline_mode<synchronous>, transform_indices = @transform_2, window_bounds = array<i64: 8, 32>}, {pipeline_mode = #tpu.pipeline_mode<synchronous>, transform_indices = @transform_3, window_bounds = array<i64: 32, 1>}, {transform_indices = @transform_4, window_bounds = array<i64: 8, 128>}, {transform_indices = @transform_5, window_bounds = array<i64: 1, 1, 128>}]} {
    %c0 = arith.constant 0 : index
    %c0_0 = arith.constant 0 : index
    %0 = vector.load %arg3[%c0, %c0_0] : memref<32x8xf32, #tpu.memory_space<vmem>>, vector<32x8xf32>
    %c0_1 = arith.constant 0 : index
    %c0_2 = arith.constant 0 : index
    %1 = vector.load %arg2[%c0_1, %c0_2] : memref<8x128xf32, #tpu.memory_space<vmem>>, vector<8x128xf32>
    %cst = arith.constant dense<0.000000e+00> : vector<32x128xf32>
    %2 = tpu.matmul %0, %1, %cst {dimension_numbers = #tpu.dot_dimension_numbers<[1], [0], [0], [1], [0, 0, 1, 1], [], []>} : vector<32x8xf32>, vector<8x128xf32>, vector<32x128xf32> -> vector<32x128xf32>
    %c0_3 = arith.constant 0 : index
    %c0_4 = arith.constant 0 : index
    %3 = vector.load %arg5[%c0_3, %c0_4] : memref<32x1xf32, #tpu.memory_space<vmem>>, vector<32x1xf32>
    %4 = vector.broadcast %3 : vector<32x1xf32> to vector<32x128xf32>
    %5 = arith.addf %2, %4 : vector<32x128xf32>
    %cst_5 = arith.constant dense<0x7F800000> : vector<128xf32>
    %6 = vector.multi_reduction <minimumf>, %5, %cst_5 [0] : vector<32x128xf32> to vector<128xf32>
    %7 = vector.shape_cast %6 : vector<128xf32> to vector<1x128xf32>
    %8 = tpu.iota {dimensions = array<i32: 0>} : vector<32x128xi32>
    %9 = vector.broadcast %7 : vector<1x128xf32> to vector<32x128xf32>
    %10 = arith.cmpf oeq, %5, %9 : vector<32x128xf32>
    %c32_i32 = arith.constant 32 : i32
    %11 = vector.broadcast %c32_i32 : i32 to vector<32x128xi32>
    %12 = arith.select %10, %8, %11 : vector<32x128xi1>, vector<32x128xi32>
    %cst_6 = arith.constant dense<2147483647> : vector<128xi32>
    %13 = vector.multi_reduction <minsi>, %12, %cst_6 [0] : vector<32x128xi32> to vector<128xi32>
    %14 = vector.shape_cast %13 : vector<128xi32> to vector<1x128xi32>
    %15 = vector.broadcast %14 : vector<1x128xi32> to vector<32x128xi32>
    %16 = arith.cmpi eq, %8, %15 : vector<32x128xi32>
    %17 = arith.extui %16 : vector<32x128xi1> to vector<32x128xi32>
    %18 = arith.sitofp %17 : vector<32x128xi32> to vector<32x128xf32>
    %c0_7 = arith.constant 0 : index
    %c0_8 = arith.constant 0 : index
    %19 = vector.load %arg4[%c0_7, %c0_8] : memref<8x32xf32, #tpu.memory_space<vmem>>, vector<8x32xf32>
    %cst_9 = arith.constant dense<0.000000e+00> : vector<8x128xf32>
    %20 = tpu.matmul %19, %18, %cst_9 {dimension_numbers = #tpu.dot_dimension_numbers<[1], [0], [0], [1], [0, 0, 1, 1], [], []>} : vector<8x32xf32>, vector<32x128xf32>, vector<8x128xf32> -> vector<8x128xf32>
    %c0_10 = arith.constant 0 : index
    %c0_11 = arith.constant 0 : index
    %21 = vector.load %arg6[%c0_10, %c0_11] : memref<8x128xf32, #tpu.memory_space<vmem>>, vector<8x128xf32>
    tpu.vector_store %arg6[%c0_10, %c0_11], %20 {strides = array<i32>} : memref<8x128xf32, #tpu.memory_space<vmem>>, vector<8x128xf32>,
    %22 = vector.shape_cast %14 : vector<1x128xi32> to vector<1x1x128xi32>
    %c0_12 = arith.constant 0 : index
    %c0_13 = arith.constant 0 : index
    %c0_14 = arith.constant 0 : index
    %23 = vector.load %arg7[%c0_12, %c0_13, %c0_14] : memref<1x1x128xi32, #tpu.memory_space<vmem>>, vector<1x1x128xi32>
    tpu.vector_store %arg7[%c0_12, %c0_13, %c0_14], %22 {strides = array<i32>} : memref<1x1x128xi32, #tpu.memory_space<vmem>>, vector<1x1x128xi32>,
    return
  }
  func.func @transform_0(%arg0: i32, %arg1: i32) -> (i32, i32) {
    %c0_i32 = arith.constant 0 : i32
    return %arg0, %arg1 : i32, i32
  }
  func.func @transform_1(%arg0: i32, %arg1: i32) -> (i32, i32) {
    %c0_i32 = arith.constant 0 : i32
    %c0_i32_0 = arith.constant 0 : i32
    %c0_i32_1 = arith.constant 0 : i32
    return %c0_i32, %c0_i32_0 : i32, i32
  }
  func.func @transform_2(%arg0: i32, %arg1: i32) -> (i32, i32) {
    %c0_i32 = arith.constant 0 : i32
    %c0_i32_0 = arith.constant 0 : i32
    %c0_i32_1 = arith.constant 0 : i32
    return %c0_i32, %c0_i32_0 : i32, i32
  }
  func.func @transform_3(%arg0: i32, %arg1: i32) -> (i32, i32) {
    %c0_i32 = arith.constant 0 : i32
    %c0_i32_0 = arith.constant 0 : i32
    %c0_i32_1 = arith.constant 0 : i32
    return %c0_i32, %c0_i32_0 : i32, i32
  }
  func.func @transform_4(%arg0: i32, %arg1: i32) -> (i32, i32) {
    %c0_i32 = arith.constant 0 : i32
    return %arg0, %arg1 : i32, i32
  }
  func.func @transform_5(%arg0: i32, %arg1: i32) -> (i32, i32, i32) {
    %c0_i32 = arith.constant 0 : i32
    %c0_i32_0 = arith.constant 0 : i32
    return %arg0, %c0_i32, %arg1 : i32, i32, i32
  }
}

</mosaic_0001>

<llo_original>
// kernel: tpu_custom_call.1
$region0: #{tpu_custom_call.1}
  #allocation0 [shape = 'u32[]', space=smem, size = 0x4, offset = 0x4, fixed_abs, tag = 'smem constant byte address 0x4 - core index']
  #allocation1 [shape = 'u32[144,128]{1,0:T(1,128)}', space=vmem, size = 0x12000, scoped, tag = 'internal scratch']
  %s0 = inlined_call_operand.vmem [shape: f32[16,256], index: 0, kind: input, shape index: {}]
  %s1 = inlined_call_operand.vmem [shape: f32[32,8], index: 1, kind: input, shape index: {}]
  %s2 = inlined_call_operand.vmem [shape: f32[8,32], index: 2, kind: input, shape index: {}]
  %s3 = inlined_call_operand.vmem [shape: f32[32,1], index: 3, kind: input, shape index: {}]
  %s4 = inlined_call_operand.hbm [shape: f32[16,256], index: 4, kind: output, shape index: {0}]
  %s5 = inlined_call_operand.hbm [shape: s32[2,1,256], index: 5, kind: output, shape index: {1}]
  %6 = xla_tuple %s4, %s5
  %s7 = sld [smem:[#allocation0]]
  $region57: #{tpu_custom_call.1} parent=0
    _
  %s9 = ssub.s32 1, %s7
  %s10 = scalar_select 0, %s9, %s7
  $region1: #{tpu_custom_call.1} parent=0
    #allocation2 [shape = 'u8[8192]{0}', space=vmem, size = 0x2000, scoped, tag = 'output window, operand 0']
    #allocation3 [shape = 's32[2]{0}', space=sflag, size = 0x8, scoped, tag = 'scoped memory for tpu_custom_call.1']
    #allocation4 [shape = 'u8[1024]{0}', space=vmem, size = 0x400, scoped, tag = 'output window, operand 1']
    #allocation5 [shape = 's32[2]{0}', space=sflag, size = 0x8, scoped, tag = 'scoped memory for tpu_custom_call.1']
    %11 = vsyncpa [#allocation3], 0
    %s12 = scalar_lea.sflag [#allocation3], 1
    %13 = vsyncpa %s12, 0
    %14 = vsyncpa [#allocation5], 0
    %s15 = scalar_lea.sflag [#allocation5], 1
    %16 = vsyncpa %s15, 0
    loop: start=0, step=1, limit=6
    $region2: #{tpu_custom_call.1} parent=1 // loop_pre_header
      _
    $region3: #{tpu_custom_call.1} parent=1 // loop_header
      %s18 = sphi 0, %s22
      %p19 = scmp.ge.s32.totalorder %s18, 6
      %s25 = sphi 0, %s37
      %s26 = sphi 0, %s33
      %s27 = sphi 0, %s25
      %s28 = sphi 0, %s26
      %s29 = sphi 0, %s27
      %s30 = sphi 0, %s28
      %s42 = sphi 0, %s44
      %s45 = sphi 0, %s42
      %s46 = sphi 0, %s45
      %s62 = sphi 0, %s46
      %s66 = sphi 0, %s66
      %s68 = sphi 0, %s66
      %s69 = sphi 0, %s68
      %s83 = sphi 0, %s69
      %s87 = sphi 0, %s87
      %s89 = sphi 0, %s87
      %s90 = sphi 0, %s89
      %s104 = sphi 0, %s90
      %s108 = sphi 0, %s108
      %s110 = sphi 0, %s108
      %s111 = sphi 0, %s110
      %s125 = sphi 0, %s111
      %s133 = sphi 0, %s135
      %s136 = sphi 0, %s133
      %s137 = sphi 0, %s136
      %s153 = sphi 0, %s137
      %s161 = sphi 0, %s163
      %s164 = sphi 0, %s161
      %s165 = sphi 0, %s164
      %s181 = sphi 0, %s165
    $region4: #{tpu_custom_call.1} parent=1 // loop_header_branch
      %21 = sbr.rel (%p19) target = $region8
    $region5: #{tpu_custom_call.1} parent=1 // loop_body
      %s23 = ssub.s32 %s18, 1
      %s24 = ssub.s32 %s18, 2
      %s31 = sadd.s32 1, %s26
      %p32 = scmp.ge.s32.totalorder %s31, 2
      %s33 = scalar_select %p32, 0, %s31
      %s34 = sadd.s32 1, %s25
      %s35 = scalar_select %p32, %s34, %s25
      %p36 = scmp.ge.s32.totalorder %s35, 2
      %s37 = scalar_select %p36, 0, %s35
      %s38 = ssub.s32 %s25, %s37
      %s39 = ssub.s32 %s26, %s33
      %s40 = sor.u32 %s38, %s39
      %p41 = scmp.eq.s32.totalorder %s40, 0
      %s43 = sadd.s32 %s42, 1
      %s44 = scalar_select %p41, %s42, %s43
      %p47 = pneg %p41
      %p48 = scmp.eq.s32.totalorder %s18, 3
      %p49 = por %p47, %p48
      %p50 = scmp.ne.s32.totalorder %s42, %s45
      %p51 = scmp.eq.s32.totalorder %s18, 0
      %p52 = por %p50, %p51
      %p53 = scmp.ne.s32.totalorder %s42, %s45
      %p54 = scmp.eq.s32.totalorder %s23, 3
      %p55 = por %p53, %p54
      %p56 = scmp.ne.s32.totalorder %s45, %s46
      %p57 = scmp.eq.s32.totalorder %s23, 0
      %p58 = por %p56, %p57
      %p59 = scmp.ne.s32.totalorder %s45, %s46
      %p60 = scmp.eq.s32.totalorder %s24, 3
      %p61 = por %p59, %p60
      %p63 = scmp.ne.s32.totalorder %s46, %s62
      %p64 = scmp.eq.s32.totalorder %s24, 0
      %p65 = por %p63, %p64
      %s67 = sadd.s32 %s66, 1
      %p70 = scmp.eq.s32.totalorder %s18, 3
      %p71 = scmp.ne.s32.totalorder %s66, %s68
      %p72 = scmp.eq.s32.totalorder %s18, 0
      %p73 = por %p71, %p72
      %p74 = scmp.ne.s32.totalorder %s66, %s68
      %p75 = scmp.eq.s32.totalorder %s23, 3
      %p76 = por %p74, %p75
      %p77 = scmp.ne.s32.totalorder %s68, %s69
      %p78 = scmp.eq.s32.totalorder %s23, 0
      %p79 = por %p77, %p78
      %p80 = scmp.ne.s32.totalorder %s68, %s69
      %p81 = scmp.eq.s32.totalorder %s24, 3
      %p82 = por %p80, %p81
      %p84 = scmp.ne.s32.totalorder %s69, %s83
      %p85 = scmp.eq.s32.totalorder %s24, 0
      %p86 = por %p84, %p85
      %s88 = sadd.s32 %s87, 1
      %p91 = scmp.eq.s32.totalorder %s18, 3
      %p92 = scmp.ne.s32.totalorder %s87, %s89
      %p93 = scmp.eq.s32.totalorder %s18, 0
      %p94 = por %p92, %p93
      %p95 = scmp.ne.s32.totalorder %s87, %s89
      %p96 = scmp.eq.s32.totalorder %s23, 3
      %p97 = por %p95, %p96
      %p98 = scmp.ne.s32.totalorder %s89, %s90
      %p99 = scmp.eq.s32.totalorder %s23, 0
      %p100 = por %p98, %p99
      %p101 = scmp.ne.s32.totalorder %s89, %s90
      %p102 = scmp.eq.s32.totalorder %s24, 3
      %p103 = por %p101, %p102
      %p105 = scmp.ne.s32.totalorder %s90, %s104
      %p106 = scmp.eq.s32.totalorder %s24, 0
      %p107 = por %p105, %p106
      %s109 = sadd.s32 %s108, 1
      %p112 = scmp.eq.s32.totalorder %s18, 3
      %p113 = scmp.ne.s32.totalorder %s108, %s110
      %p114 = scmp.eq.s32.totalorder %s18, 0
      %p115 = por %p113, %p114
      %p116 = scmp.ne.s32.totalorder %s108, %s110
      %p117 = scmp.eq.s32.totalorder %s23, 3
      %p118 = por %p116, %p117
      %p119 = scmp.ne.s32.totalorder %s110, %s111
      %p120 = scmp.eq.s32.totalorder %s23, 0
      %p121 = por %p119, %p120
      %p122 = scmp.ne.s32.totalorder %s110, %s111
      %p123 = scmp.eq.s32.totalorder %s24, 3
      %p124 = por %p122, %p123
      %p126 = scmp.ne.s32.totalorder %s111, %s125
      %p127 = scmp.eq.s32.totalorder %s24, 0
      %p128 = por %p126, %p127
      %s129 = ssub.s32 %s25, %s37
      %s130 = ssub.s32 %s26, %s33
      %s131 = sor.u32 %s129, %s130
      %p132 = scmp.eq.s32.totalorder %s131, 0
      %s134 = sadd.s32 %s133, 1
      %s135 = scalar_select %p132, %s133, %s134
      %p138 = pneg %p132
      %p139 = scmp.eq.s32.totalorder %s18, 3
      %p140 = por %p138, %p139
      %p141 = scmp.ne.s32.totalorder %s133, %s136
      %p142 = scmp.eq.s32.totalorder %s18, 0
      %p143 = por %p141, %p142
      %p144 = scmp.ne.s32.totalorder %s133, %s136
      %p145 = scmp.eq.s32.totalorder %s23, 3
      %p146 = por %p144, %p145
      %p147 = scmp.ne.s32.totalorder %s136, %s137
      %p148 = scmp.eq.s32.totalorder %s23, 0
      %p149 = por %p147, %p148
      %p150 = scmp.ne.s32.totalorder %s136, %s137
      %p151 = scmp.eq.s32.totalorder %s24, 3
      %p152 = por %p150, %p151
      %p154 = scmp.ne.s32.totalorder %s137, %s153
      %p155 = scmp.eq.s32.totalorder %s24, 0
      %p156 = por %p154, %p155
      %s157 = ssub.s32 %s25, %s37
      %s158 = ssub.s32 %s26, %s33
      %s159 = sor.u32 %s157, %s158
      %p160 = scmp.eq.s32.totalorder %s159, 0
      %s162 = sadd.s32 %s161, 1
      %s163 = scalar_select %p160, %s161, %s162
      %p166 = pneg %p160
      %p167 = scmp.eq.s32.totalorder %s18, 3
      %p168 = por %p166, %p167
      %p169 = scmp.ne.s32.totalorder %s161, %s164
      %p170 = scmp.eq.s32.totalorder %s18, 0
      %p171 = por %p169, %p170
      %p172 = scmp.ne.s32.totalorder %s161, %s164
      %p173 = scmp.eq.s32.totalorder %s23, 3
      %p174 = por %p172, %p173
      %p175 = scmp.ne.s32.totalorder %s164, %s165
      %p176 = scmp.eq.s32.totalorder %s23, 0
      %p177 = por %p175, %p176
      %p178 = scmp.ne.s32.totalorder %s164, %s165
      %p179 = scmp.eq.s32.totalorder %s24, 3
      %p180 = por %p178, %p179
      %p182 = scmp.ne.s32.totalorder %s165, %s181
      %p183 = scmp.eq.s32.totalorder %s24, 0
      %p184 = por %p182, %p183
      %p185 = scmp.le.s32.totalorder 1, %s18
      %p186 = scmp.lt.s32.totalorder %s18, 5
      %p187 = pnand %p185, %p186
      %p188 = pneg %p187
      // Predicated region
      $region9: #{tpu_custom_call.1} parent=5 // pred_check
        _
      $region10: #{tpu_custom_call.1} parent=5 // pred_check_branch
        %190 = sbr.rel (%p187) target = $region12
      $region11: #{tpu_custom_call.1} parent=5 // pred_region
        %s191 = ssub.s32 %s18, 1
        // Predicated region
        $region13: #{tpu_custom_call.1} parent=11 // pred_check
          %p192 = pneg %p79
        $region14: #{tpu_custom_call.1} parent=11 // pred_check_branch
          %194 = sbr.rel (%p192) target = $region16
        $region15: #{tpu_custom_call.1} parent=11 // pred_region
          _
        $region16: #{tpu_custom_call.1} parent=11 // pred_fallthru
          _
        // Predicated region
        $region17: #{tpu_custom_call.1} parent=11 // pred_check
          %p195 = pneg %p100
        $region18: #{tpu_custom_call.1} parent=11 // pred_check_branch
          %197 = sbr.rel (%p195) target = $region20
        $region19: #{tpu_custom_call.1} parent=11 // pred_region
          _
        $region20: #{tpu_custom_call.1} parent=11 // pred_fallthru
          _
        // Predicated region
        $region21: #{tpu_custom_call.1} parent=11 // pred_check
          %p198 = pneg %p121
        $region22: #{tpu_custom_call.1} parent=11 // pred_check_branch
          %200 = sbr.rel (%p198) target = $region24
        $region23: #{tpu_custom_call.1} parent=11 // pred_region
          _
        $region24: #{tpu_custom_call.1} parent=11 // pred_fallthru
          _
      $region12: #{tpu_custom_call.1} parent=5 // pred_fallthru
        _
      %p201 = scmp.lt.s32.totalorder %s18, 4
      // Predicated region
      $region25: #{tpu_custom_call.1} parent=5 // pred_check
        %p202 = pneg %p201
      $region26: #{tpu_custom_call.1} parent=5 // pred_check_branch
        %204 = sbr.rel (%p202) target = $region28
      $region27: #{tpu_custom_call.1} parent=5 // pred_region
        // Predicated region
        $region29: #{tpu_custom_call.1} parent=27 // pred_check
          %p205 = pneg %p52
        $region30: #{tpu_custom_call.1} parent=27 // pred_check_branch
          %207 = sbr.rel (%p205) target = $region32
        $region31: #{tpu_custom_call.1} parent=27 // pred_region
          %p208 = scmp.lt.s32.totalorder %s25, 1
          %s209 = scalar_select %p208, %s25, 1
          %p210 = scmp.lt.s32.totalorder %s26, 1
          %s211 = scalar_select %p210, %s26, 1
          %s212 = smul.addr %s209, 2
          %s213 = sadd.s32 %s211, %s212
          %s214 = smul.addr %s213, 8
          %s215 = scalar_lea.vmem %s0, %s214
        $region32: #{tpu_custom_call.1} parent=27 // pred_fallthru
          _
      $region28: #{tpu_custom_call.1} parent=5 // pred_fallthru
        _
      %p216 = scmp.le.s32.totalorder 1, %s18
      %p217 = scmp.lt.s32.totalorder %s18, 5
      %p218 = pnand %p216, %p217
      %p219 = pneg %p218
      // Predicated region
      $region33: #{tpu_custom_call.1} parent=5 // pred_check
        _
      $region34: #{tpu_custom_call.1} parent=5 // pred_check_branch
        %221 = sbr.rel (%p218) target = $region36
      $region35: #{tpu_custom_call.1} parent=5 // pred_region
        %s222 = ssub.s32 %s18, 1
        %p223 = scmp.lt.s32.totalorder %s27, 1
        %s224 = scalar_select %p223, %s27, 1
        %p225 = scmp.lt.s32.totalorder %s28, 1
        %s226 = scalar_select %p225, %s28, 1
        %s227 = smul.addr %s224, 2
        %s228 = sadd.s32 %s226, %s227
        %s229 = smul.addr %s228, 8
        %s230 = scalar_lea.vmem %s0, %s229
        %p231 = pneg %p58
        %p232 = pneg %p55
        %p233 = pneg %p79
        %p234 = pneg %p76
        %p235 = pneg %p100
        %p236 = pneg %p97
        %p237 = pneg %p121
        %p238 = pneg %p118
        %p239 = pneg %p149
        %p240 = pneg %p146
        %s241 = sand.u32 %s136, 1
        %s242 = scalar_lea.sflag [#allocation3], %s241
        %s243 = sand.u32 %s136, 1
        %s244 = smul.addr %s243, 8
        %s245 = scalar_lea.vmem [#allocation2], %s244
        %p246 = pneg %p177
        %p247 = pneg %p174
        %s248 = sand.u32 %s164, 1
        %s249 = scalar_lea.sflag [#allocation5], %s248
        %s250 = sand.u32 %s164, 1
        %s251 = scalar_lea.vmem [#allocation4], %s250
        %p252 = scmp.lt.s32.totalorder %s27, 1
        %s253 = scalar_select %p252, %s27, 1
        %p254 = scmp.lt.s32.totalorder %s28, 1
        %s255 = scalar_select %p254, %s28, 1
        %s256 = smul.addr %s253, 2
        %s257 = sadd.s32 %s255, %s256
        %s258 = smul.addr %s257, 8
        %s259 = scalar_lea.vmem %s0, %s258
        %v260 = vld [vmem:[%s1] sm:$0xff]
        %v261 = vld [vmem:[%s1 + $0x8] sm:$0xff]
        %v262 = vld [vmem:[%s1 + $0x10] sm:$0xff]
        %v263 = vld [vmem:[%s1 + $0x18] sm:$0xff]
        %v264 = vld [vmem:[%s259] sm:$0xff]
        %v265 = vld [vmem:[%s3] sm:$0xff]
        %v266 = vld [vmem:[%s3 + $0x8] sm:$0xff]
        %v267 = vld [vmem:[%s3 + $0x10] sm:$0xff]
        %v268 = vld [vmem:[%s3 + $0x18] sm:$0xff]
        %270 = vset.pattern.permute.xlu0 0
        %271 = vperm.xlu0 %270, %v265
        %v272 = vpop.permute.xlu0 %271
        %275 = vset.pattern.permute.xlu0 0
        %276 = vperm.xlu0 %275, %v266
        %v277 = vpop.permute.xlu0 %276
        %280 = vset.pattern.permute.xlu0 0
        %281 = vperm.xlu0 %280, %v267
        %v282 = vpop.permute.xlu0 %281
        %285 = vset.pattern.permute.xlu0 0
        %286 = vperm.xlu0 %285, %v268
        %v287 = vpop.permute.xlu0 %286
        %vm289 = vcmask 64512
        %v291 = vsel %vm289, %v260, 0
        %v294 = vsel %vm289, %v261, 0
        %v297 = vsel %vm289, %v262, 0
        %v300 = vsel %vm289, %v263, 0
        %302 = vmatprep.subr.mxu0 0.0
        %303 = vmatpush1.msra.mxu0 %v264
        %304 = vmatprep.subr.mxu0 0.0
        %305 = vmatpush1.msra.mxu0 0.0
        %306 = vmatprep.subr.mxu0 0.0
        %307 = vmatpush1.msra.mxu0 0.0
        %308 = vmatprep.subr.mxu0 0.0
        %309 = vmatpush1.msra.mxu0 0.0
        %310 = vmatprep.subr.mxu0 0.0
        %311 = vmatpush1.msra.mxu0 0.0
        %312 = vmatprep.subr.mxu0 0.0
        %313 = vmatpush1.msra.mxu0 0.0
        %314 = vmatprep.subr.mxu0 0.0
        %315 = vmatpush1.msra.mxu0 0.0
        %316 = vmatprep.subr.mxu0 0.0
        %317 = vmatpush1.msra.mxu0 0.0
        %318 = vmatprep.subr.mxu0 0.0
        %319 = vmatpush1.msra.mxu0 0.0
        %320 = vmatprep.subr.mxu0 0.0
        %321 = vmatpush1.msra.mxu0 0.0
        %322 = vmatprep.subr.mxu0 0.0
        %323 = vmatpush1.msra.mxu0 0.0
        %324 = vmatprep.subr.mxu0 0.0
        %325 = vmatpush1.msra.mxu0 0.0
        %326 = vmatprep.subr.mxu0 0.0
        %327 = vmatpush1.msra.mxu0 0.0
        %328 = vmatprep.subr.mxu0 0.0
        %329 = vmatpush1.msra.mxu0 0.0
        %330 = vmatprep.subr.mxu0 0.0
        %331 = vmatpush1.msra.mxu0 0.0
        %332 = vmatprep.subr.mxu0 0.0
        %333 = vmatpush1.msra.mxu0 0.0
        %334 = vmatprep.subr.mxu0 0.0
        %335 = vmatpush1.msra.mxu0 0.0
        %336 = vmatprep.subr.mxu0 0.0
        %337 = vmatpush1.msra.mxu0 0.0
        %338 = vmatprep.subr.mxu0 0.0
        %339 = vmatpush1.msra.mxu0 0.0
        %340 = vmatprep.subr.mxu0 0.0
        %341 = vmatpush1.msra.mxu0 0.0
        %342 = vmatprep.subr.mxu0 0.0
        %343 = vmatpush1.msra.mxu0 0.0
        %344 = vmatprep.subr.mxu0 0.0
        %345 = vmatpush1.msra.mxu0 0.0
        %346 = vmatprep.subr.mxu0 0.0
        %347 = vmatpush1.msra.mxu0 0.0
        %348 = vmatprep.subr.mxu0 0.0
        %349 = vmatpush1.msra.mxu0 0.0
        %350 = vmatprep.subr.mxu0 0.0
        %351 = vmatpush1.msra.mxu0 0.0
        %352 = vmatprep.subr.mxu0 0.0
        %353 = vmatpush1.msra.mxu0 0.0
        %354 = vmatprep.subr.mxu0 0.0
        %355 = vmatpush1.msra.mxu0 0.0
        %356 = vmatprep.subr.mxu0 0.0
        %357 = vmatpush1.msra.mxu0 0.0
        %358 = vmatprep.subr.mxu0 0.0
        %359 = vmatpush1.msra.mxu0 0.0
        %360 = vmatprep.subr.mxu0 0.0
        %361 = vmatpush1.msra.mxu0 0.0
        %362 = vmatprep.subr.mxu0 0.0
        %363 = vmatpush1.msra.mxu0 0.0
        %364 = vmatprep.subr.mxu0 0.0
        %365 = vmatpush1.msra.mxu0 0.0
        %366 = vmatprep.mubr.f32.mxu0 0.0
        %367 = vmatmul.mubr.f32.gmra.mrb[0].mxu0 %v291
        %v368 = vpop.f32.mrb[0].mxu0
        %v369 = vadd.f32 %v272, %v368
        %v370 = vpop.f32.mrb[0].mxu0
        %371 = vmatprep.mubr.f32.mxu0 0.0
        %372 = vmatmul.mubr.f32.gmra.mrb[0].mxu0 %v294
        %v373 = vpop.f32.mrb[0].mxu0
        %v374 = vadd.f32 %v277, %v373
        %v375 = vpop.f32.mrb[0].mxu0
        %376 = vmatprep.mubr.f32.mxu0 0.0
        %377 = vmatmul.mubr.f32.gmra.mrb[0].mxu0 %v297
        %v378 = vpop.f32.mrb[0].mxu0
        %v379 = vadd.f32 %v282, %v378
        %v380 = vpop.f32.mrb[0].mxu0
        %381 = vmatprep.mubr.f32.mxu0 0.0
        %382 = vmatmul.mubr.f32.gmra.mrb[0].mxu0 %v300
        %v383 = vpop.f32.mrb[0].mxu0
        %v384 = vadd.f32 %v287, %v383
        %v385 = vpop.f32.mrb[0].mxu0
        %386 = vdwg.mxu0
        %v387 = vmin.f32 %v369, %v374
        %v388 = vmin.f32 %v379, %v384
        %v389 = vmin.f32 %v387, %v388
        %v390 = vrot.slane %v389, 4
        %v391 = vmin.f32 %v389, %v390
        %v392 = vrot.slane %v391, 2
        %v393 = vmin.f32 %v391, %v392
        %v394 = vrot.slane %v393, 1
        %v395 = vmin.f32 %v393, %v394
        %v396 = vlaneseq
        %v397 = vshrl.u32 %v396, 7
        %v398 = vadd.s32 %v397, 8
        %v399 = vadd.s32 %v397, 16
        %v400 = vadd.s32 %v397, 24
        %vm401 = vcmp.eq.f32.partialorder %v369, %v395
        %vm402 = vcmp.eq.f32.partialorder %v374, %v395
        %vm403 = vcmp.eq.f32.partialorder %v379, %v395
        %vm404 = vcmp.eq.f32.partialorder %v384, %v395
        %v405 = vsel %vm401, %v397, 32
        %v406 = vsel %vm402, %v398, 32
        %v407 = vsel %vm403, %v399, 32
        %v408 = vsel %vm404, %v400, 32
        %vm409 = vcmp.lt.s32.totalorder %v405, %v406
        %v410 = vsel %vm409, %v405, %v406
        %vm411 = vcmp.lt.s32.totalorder %v407, %v408
        %v412 = vsel %vm411, %v407, %v408
        %vm413 = vcmp.lt.s32.totalorder %v410, %v412
        %v414 = vsel %vm413, %v410, %v412
        %v415 = vrot.slane %v414, 4
        %vm416 = vcmp.lt.s32.totalorder %v414, %v415
        %v417 = vsel %vm416, %v414, %v415
        %v418 = vrot.slane %v417, 2
        %vm419 = vcmp.lt.s32.totalorder %v417, %v418
        %v420 = vsel %vm419, %v417, %v418
        %v421 = vrot.slane %v420, 1
        %vm422 = vcmp.lt.s32.totalorder %v420, %v421
        %v423 = vsel %vm422, %v420, %v421
        %vm424 = vcmp.eq.s32.totalorder %v397, %v423
        %vm425 = vcmp.eq.s32.totalorder %v398, %v423
        %vm426 = vcmp.eq.s32.totalorder %v399, %v423
        %vm427 = vcmp.eq.s32.totalorder %v400, %v423
        %v428 = vsel %vm424, 1, 0
        %v429 = vsel %vm425, 1, 0
        %v430 = vsel %vm426, 1, 0
        %v431 = vsel %vm427, 1, 0
        %v432 = vcvt.s32.f32 %v428
        %v433 = vcvt.s32.f32 %v429
        %v434 = vcvt.s32.f32 %v430
        %v435 = vcvt.s32.f32 %v431
        %v436 = vld [vmem:[%s2] sm:$0xff]
        %vm437 = vcmask 261120
        %v439 = vsel %vm437, %v436, 0
        %441 = vmatprep.subr.mxu0 0.0
        %442 = vmatpush1.msra.mxu0 %v432
        %443 = vmatprep.subr.mxu0 0.0
        %444 = vmatpush1.msra.mxu0 %v433
        %445 = vmatprep.subr.mxu0 0.0
        %446 = vmatpush1.msra.mxu0 %v434
        %447 = vmatprep.subr.mxu0 0.0
        %448 = vmatpush1.msra.mxu0 %v435
        %449 = vmatprep.subr.mxu0 0.0
        %450 = vmatpush1.msra.mxu0 0.0
        %451 = vmatprep.subr.mxu0 0.0
        %452 = vmatpush1.msra.mxu0 0.0
        %453 = vmatprep.subr.mxu0 0.0
        %454 = vmatpush1.msra.mxu0 0.0
        %455 = vmatprep.subr.mxu0 0.0
        %456 = vmatpush1.msra.mxu0 0.0
        %457 = vmatprep.subr.mxu0 0.0
        %458 = vmatpush1.msra.mxu0 0.0
        %459 = vmatprep.subr.mxu0 0.0
        %460 = vmatpush1.msra.mxu0 0.0
        %461 = vmatprep.subr.mxu0 0.0
        %462 = vmatpush1.msra.mxu0 0.0
        %463 = vmatprep.subr.mxu0 0.0
        %464 = vmatpush1.msra.mxu0 0.0
        %465 = vmatprep.subr.mxu0 0.0
        %466 = vmatpush1.msra.mxu0 0.0
        %467 = vmatprep.subr.mxu0 0.0
        %468 = vmatpush1.msra.mxu0 0.0
        %469 = vmatprep.subr.mxu0 0.0
        %470 = vmatpush1.msra.mxu0 0.0
        %471 = vmatprep.subr.mxu0 0.0
        %472 = vmatpush1.msra.mxu0 0.0
        %473 = vmatprep.subr.mxu0 0.0
        %474 = vmatpush1.msra.mxu0 0.0
        %475 = vmatprep.subr.mxu0 0.0
        %476 = vmatpush1.msra.mxu0 0.0
        %477 = vmatprep.subr.mxu0 0.0
        %478 = vmatpush1.msra.mxu0 0.0
        %479 = vmatprep.subr.mxu0 0.0
        %480 = vmatpush1.msra.mxu0 0.0
        %481 = vmatprep.subr.mxu0 0.0
        %482 = vmatpush1.msra.mxu0 0.0
        %483 = vmatprep.subr.mxu0 0.0
        %484 = vmatpush1.msra.mxu0 0.0
        %485 = vmatprep.subr.mxu0 0.0
        %486 = vmatpush1.msra.mxu0 0.0
        %487 = vmatprep.subr.mxu0 0.0
        %488 = vmatpush1.msra.mxu0 0.0
        %489 = vmatprep.subr.mxu0 0.0
        %490 = vmatpush1.msra.mxu0 0.0
        %491 = vmatprep.subr.mxu0 0.0
        %492 = vmatpush1.msra.mxu0 0.0
        %493 = vmatprep.subr.mxu0 0.0
        %494 = vmatpush1.msra.mxu0 0.0
        %495 = vmatprep.subr.mxu0 0.0
        %496 = vmatpush1.msra.mxu0 0.0
        %497 = vmatprep.subr.mxu0 0.0
        %498 = vmatpush1.msra.mxu0 0.0
        %499 = vmatprep.subr.mxu0 0.0
        %500 = vmatpush1.msra.mxu0 0.0
        %501 = vmatprep.subr.mxu0 0.0
        %502 = vmatpush1.msra.mxu0 0.0
        %503 = vmatprep.subr.mxu0 0.0
        %504 = vmatpush1.msra.mxu0 0.0
        %505 = vmatprep.mubr.f32.mxu0 0.0
        %506 = vmatmul.mubr.f32.gmra.mrb[0].mxu0 %v439
        %v507 = vpop.f32.mrb[0].mxu0
        %v508 = vadd.f32 0.0, %v507
        %v509 = vpop.f32.mrb[0].mxu0
        %510 = vdwg.mxu0
        %511 = vst [vmem:[%s245] sm:$0xff] %v508
        %512 = vst [vmem:[%s251] sm:$0x1] %v423
        %s513 = sand.u32 %s136, 1
        %s514 = scalar_lea.sflag [#allocation3], %s513
        %s515 = sand.u32 %s136, 1
        %s516 = smul.addr %s515, 8
        %s517 = scalar_lea.vmem [#allocation2], %s516
        %s518 = sand.u32 %s164, 1
        %s519 = scalar_lea.sflag [#allocation5], %s518
        %s520 = sand.u32 %s164, 1
        %s521 = scalar_lea.vmem [#allocation4], %s520
        // Predicated region
        $region37: #{tpu_custom_call.1} parent=35 // pred_check
          %p522 = pneg %p146
        $region38: #{tpu_custom_call.1} parent=35 // pred_check_branch
          %524 = sbr.rel (%p522) target = $region40
        $region39: #{tpu_custom_call.1} parent=35 // pred_region
          %s526 = ssub.s32 128, 128
          %527 = vsyncadd %s514, %s526
          %s528 = smul.addr %s27, 2
          %s529 = sadd.s32 %s28, %s528
          %s530 = smul.addr %s529, 128
          %s531 = scalar_lea.hbm %s4, %s530
          %s533 = sshll.u32 %s517, 4
          %s534 = int_to_ptr.vmem [resolvable:$true] %s533
          %536 = dma.vmem_to_hbm [thread:$0]  %s534, 128, %s531, %s514
        $region40: #{tpu_custom_call.1} parent=35 // pred_fallthru
          _
        // Predicated region
        $region41: #{tpu_custom_call.1} parent=35 // pred_check
          %p537 = pneg %p174
        $region42: #{tpu_custom_call.1} parent=35 // pred_check_branch
          %539 = sbr.rel (%p537) target = $region44
        $region43: #{tpu_custom_call.1} parent=35 // pred_region
          %s541 = ssub.s32 16, 16
          %542 = vsyncadd %s519, %s541
          %s543 = smul.addr %s27, 2
          %s544 = sadd.s32 %s28, %s543
          %s545 = smul.addr %s544, 16
          %s546 = scalar_lea.hbm %s5, %s545
          %s548 = sshll.u32 %s521, 4
          %s549 = int_to_ptr.vmem [resolvable:$true] %s548
          %551 = dma.vmem_to_hbm [thread:$0]  %s549, 16, %s546, %s519
        $region44: #{tpu_custom_call.1} parent=35 // pred_fallthru
          _
      $region36: #{tpu_custom_call.1} parent=5 // pred_fallthru
        _
      %p552 = scmp.le.s32.totalorder 2, %s18
      // Predicated region
      $region45: #{tpu_custom_call.1} parent=5 // pred_check
        %p553 = pneg %p552
      $region46: #{tpu_custom_call.1} parent=5 // pred_check_branch
        %555 = sbr.rel (%p553) target = $region48
      $region47: #{tpu_custom_call.1} parent=5 // pred_region
        %s556 = ssub.s32 %s18, 2
        // Predicated region
        $region49: #{tpu_custom_call.1} parent=47 // pred_check
          %p557 = pneg %p152
        $region50: #{tpu_custom_call.1} parent=47 // pred_check_branch
          %559 = sbr.rel (%p557) target = $region52
        $region51: #{tpu_custom_call.1} parent=47 // pred_region
          %s560 = sand.u32 %s137, 1
          %s561 = scalar_lea.sflag [#allocation3], %s560
          %s562 = sand.u32 %s137, 1
          %s563 = smul.addr %s562, 8
          %s564 = scalar_lea.vmem [#allocation2], %s563
          %565 = dma.done %s561, 128
        $region52: #{tpu_custom_call.1} parent=47 // pred_fallthru
          _
        // Predicated region
        $region53: #{tpu_custom_call.1} parent=47 // pred_check
          %p566 = pneg %p180
        $region54: #{tpu_custom_call.1} parent=47 // pred_check_branch
          %568 = sbr.rel (%p566) target = $region56
        $region55: #{tpu_custom_call.1} parent=47 // pred_region
          %s569 = sand.u32 %s165, 1
          %s570 = scalar_lea.sflag [#allocation5], %s569
          %s571 = sand.u32 %s165, 1
          %s572 = scalar_lea.vmem [#allocation4], %s571
          %573 = dma.done %s570, 16
        $region56: #{tpu_custom_call.1} parent=47 // pred_fallthru
          _
      $region48: #{tpu_custom_call.1} parent=5 // pred_fallthru
        _
    $region6: #{tpu_custom_call.1} parent=1 // loop_footer
      %s22 = sadd.s32 1, %s18
    $region7: #{tpu_custom_call.1} parent=1 // loop_footer_branch
      %17 = sbr.rel target = $region3
    $region8: #{tpu_custom_call.1} parent=1 // loop_exit
      _
    %574 = vsyncpa [#allocation3], 1
    %s575 = scalar_lea.sflag [#allocation3], 1
    %576 = vsyncpa %s575, 1
    %577 = vsyncpa [#allocation5], 1
    %s578 = scalar_lea.sflag [#allocation5], 1
    %579 = vsyncpa %s578, 1

// kernel: tpu_custom_call.1
$region0: #{tpu_custom_call.1}
  #allocation0 [shape = 'u32[]', space=smem, size = 0x4, offset = 0x4, fixed_abs, tag = 'smem constant byte address 0x4 - core index']
  #allocation1 [shape = 'u32[144,128]{1,0:T(1,128)}', space=vmem, size = 0x12000, scoped, tag = 'internal scratch']
  %s0 = inlined_call_operand.vmem [shape: f32[16,256], index: 0, kind: input, shape index: {}]
  %s1 = inlined_call_operand.vmem [shape: f32[32,8], index: 1, kind: input, shape index: {}]
  %s2 = inlined_call_operand.vmem [shape: f32[8,32], index: 2, kind: input, shape index: {}]
  %s3 = inlined_call_operand.vmem [shape: f32[32,1], index: 3, kind: input, shape index: {}]
  %s4 = inlined_call_operand.hbm [shape: f32[16,256], index: 4, kind: output, shape index: {0}]
  %s5 = inlined_call_operand.hbm [shape: s32[2,1,256], index: 5, kind: output, shape index: {1}]
  %6 = xla_tuple %s4, %s5
  %s7 = sld [smem:[#allocation0]]
  $region57: #{tpu_custom_call.1} parent=0
    _
  %s9 = ssub.s32 1, %s7
  %s10 = scalar_select 0, %s9, %s7
  $region1: #{tpu_custom_call.1} parent=0
    #allocation2 [shape = 'u8[8192]{0}', space=vmem, size = 0x2000, scoped, tag = 'output window, operand 0']
    #allocation3 [shape = 's32[2]{0}', space=sflag, size = 0x8, scoped, tag = 'scoped memory for tpu_custom_call.1']
    #allocation4 [shape = 'u8[1024]{0}', space=vmem, size = 0x400, scoped, tag = 'output window, operand 1']
    #allocation5 [shape = 's32[2]{0}', space=sflag, size = 0x8, scoped, tag = 'scoped memory for tpu_custom_call.1']
    %11 = vsyncpa [#allocation3], 0
    %s12 = scalar_lea.sflag [#allocation3], 1
    %13 = vsyncpa %s12, 0
    %14 = vsyncpa [#allocation5], 0
    %s15 = scalar_lea.sflag [#allocation5], 1
    %16 = vsyncpa %s15, 0
    loop: start=0, step=1, limit=6
    $region2: #{tpu_custom_call.1} parent=1 // loop_pre_header
      _
    $region3: #{tpu_custom_call.1} parent=1 // loop_header
      %s18 = sphi 0, %s22
      %p19 = scmp.ge.s32.totalorder %s18, 6
      %s25 = sphi 0, %s37
      %s26 = sphi 0, %s33
      %s27 = sphi 0, %s25
      %s28 = sphi 0, %s26
      %s29 = sphi 0, %s27
      %s30 = sphi 0, %s28
      %s42 = sphi 0, %s44
      %s45 = sphi 0, %s42
      %s46 = sphi 0, %s45
      %s62 = sphi 0, %s46
      %s66 = sphi 0, %s66
      %s68 = sphi 0, %s66
      %s69 = sphi 0, %s68
      %s83 = sphi 0, %s69
      %s87 = sphi 0, %s87
      %s89 = sphi 0, %s87
      %s90 = sphi 0, %s89
      %s104 = sphi 0, %s90
      %s108 = sphi 0, %s108
      %s110 = sphi 0, %s108
      %s111 = sphi 0, %s110
      %s125 = sphi 0, %s111
      %s133 = sphi 0, %s135
      %s136 = sphi 0, %s133
      %s137 = sphi 0, %s136
      %s153 = sphi 0, %s137
      %s161 = sphi 0, %s163
      %s164 = sphi 0, %s161
      %s165 = sphi 0, %s164
      %s181 = sphi 0, %s165
    $region4: #{tpu_custom_call.1} parent=1 // loop_header_branch
      %21 = sbr.rel (%p19) target = $region8
    $region5: #{tpu_custom_call.1} parent=1 // loop_body
      %s23 = ssub.s32 %s18, 1
      %s24 = ssub.s32 %s18, 2
      %s31 = sadd.s32 1, %s26
      %p32 = scmp.ge.s32.totalorder %s31, 2
      %s33 = scalar_select %p32, 0, %s31
      %s34 = sadd.s32 1, %s25
      %s35 = scalar_select %p32, %s34, %s25
      %p36 = scmp.ge.s32.totalorder %s35, 2
      %s37 = scalar_select %p36, 0, %s35
      %s38 = ssub.s32 %s25, %s37
      %s39 = ssub.s32 %s26, %s33
      %s40 = sor.u32 %s38, %s39
      %p41 = scmp.eq.s32.totalorder %s40, 0
      %s43 = sadd.s32 %s42, 1
      %s44 = scalar_select %p41, %s42, %s43
      %p47 = pneg %p41
      %p48 = scmp.eq.s32.totalorder %s18, 3
      %p49 = por %p47, %p48
      %p50 = scmp.ne.s32.totalorder %s42, %s45
      %p51 = scmp.eq.s32.totalorder %s18, 0
      %p52 = por %p50, %p51
      %p53 = scmp.ne.s32.totalorder %s42, %s45
      %p54 = scmp.eq.s32.totalorder %s23, 3
      %p55 = por %p53, %p54
      %p56 = scmp.ne.s32.totalorder %s45, %s46
      %p57 = scmp.eq.s32.totalorder %s23, 0
      %p58 = por %p56, %p57
      %p59 = scmp.ne.s32.totalorder %s45, %s46
      %p60 = scmp.eq.s32.totalorder %s24, 3
      %p61 = por %p59, %p60
      %p63 = scmp.ne.s32.totalorder %s46, %s62
      %p64 = scmp.eq.s32.totalorder %s24, 0
      %p65 = por %p63, %p64
      %s67 = sadd.s32 %s66, 1
      %p70 = scmp.eq.s32.totalorder %s18, 3
      %p71 = scmp.ne.s32.totalorder %s66, %s68
      %p72 = scmp.eq.s32.totalorder %s18, 0
      %p73 = por %p71, %p72
      %p74 = scmp.ne.s32.totalorder %s66, %s68
      %p75 = scmp.eq.s32.totalorder %s23, 3
      %p76 = por %p74, %p75
      %p77 = scmp.ne.s32.totalorder %s68, %s69
      %p78 = scmp.eq.s32.totalorder %s23, 0
      %p79 = por %p77, %p78
      %p80 = scmp.ne.s32.totalorder %s68, %s69
      %p81 = scmp.eq.s32.totalorder %s24, 3
      %p82 = por %p80, %p81
      %p84 = scmp.ne.s32.totalorder %s69, %s83
      %p85 = scmp.eq.s32.totalorder %s24, 0
      %p86 = por %p84, %p85
      %s88 = sadd.s32 %s87, 1
      %p91 = scmp.eq.s32.totalorder %s18, 3
      %p92 = scmp.ne.s32.totalorder %s87, %s89
      %p93 = scmp.eq.s32.totalorder %s18, 0
      %p94 = por %p92, %p93
      %p95 = scmp.ne.s32.totalorder %s87, %s89
      %p96 = scmp.eq.s32.totalorder %s23, 3
      %p97 = por %p95, %p96
      %p98 = scmp.ne.s32.totalorder %s89, %s90
      %p99 = scmp.eq.s32.totalorder %s23, 0
      %p100 = por %p98, %p99
      %p101 = scmp.ne.s32.totalorder %s89, %s90
      %p102 = scmp.eq.s32.totalorder %s24, 3
      %p103 = por %p101, %p102
      %p105 = scmp.ne.s32.totalorder %s90, %s104
      %p106 = scmp.eq.s32.totalorder %s24, 0
      %p107 = por %p105, %p106
      %s109 = sadd.s32 %s108, 1
      %p112 = scmp.eq.s32.totalorder %s18, 3
      %p113 = scmp.ne.s32.totalorder %s108, %s110
      %p114 = scmp.eq.s32.totalorder %s18, 0
      %p115 = por %p113, %p114
      %p116 = scmp.ne.s32.totalorder %s108, %s110
      %p117 = scmp.eq.s32.totalorder %s23, 3
      %p118 = por %p116, %p117
      %p119 = scmp.ne.s32.totalorder %s110, %s111
      %p120 = scmp.eq.s32.totalorder %s23, 0
      %p121 = por %p119, %p120
      %p122 = scmp.ne.s32.totalorder %s110, %s111
      %p123 = scmp.eq.s32.totalorder %s24, 3
      %p124 = por %p122, %p123
      %p126 = scmp.ne.s32.totalorder %s111, %s125
      %p127 = scmp.eq.s32.totalorder %s24, 0
      %p128 = por %p126, %p127
      %s129 = ssub.s32 %s25, %s37
      %s130 = ssub.s32 %s26, %s33
      %s131 = sor.u32 %s129, %s130
      %p132 = scmp.eq.s32.totalorder %s131, 0
      %s134 = sadd.s32 %s133, 1
      %s135 = scalar_select %p132, %s133, %s134
      %p138 = pneg %p132
      %p139 = scmp.eq.s32.totalorder %s18, 3
      %p140 = por %p138, %p139
      %p141 = scmp.ne.s32.totalorder %s133, %s136
      %p142 = scmp.eq.s32.totalorder %s18, 0
      %p143 = por %p141, %p142
      %p144 = scmp.ne.s32.totalorder %s133, %s136
      %p145 = scmp.eq.s32.totalorder %s23, 3
      %p146 = por %p144, %p145
      %p147 = scmp.ne.s32.totalorder %s136, %s137
      %p148 = scmp.eq.s32.totalorder %s23, 0
      %p149 = por %p147, %p148
      %p150 = scmp.ne.s32.totalorder %s136, %s137
      %p151 = scmp.eq.s32.totalorder %s24, 3
      %p152 = por %p150, %p151
      %p154 = scmp.ne.s32.totalorder %s137, %s153
      %p155 = scmp.eq.s32.totalorder %s24, 0
      %p156 = por %p154, %p155
      %s157 = ssub.s32 %s25, %s37
      %s158 = ssub.s32 %s26, %s33
      %s159 = sor.u32 %s157, %s158
      %p160 = scmp.eq.s32.totalorder %s159, 0
      %s162 = sadd.s32 %s161, 1
      %s163 = scalar_select %p160, %s161, %s162
      %p166 = pneg %p160
      %p167 = scmp.eq.s32.totalorder %s18, 3
      %p168 = por %p166, %p167
      %p169 = scmp.ne.s32.totalorder %s161, %s164
      %p170 = scmp.eq.s32.totalorder %s18, 0
      %p171 = por %p169, %p170
      %p172 = scmp.ne.s32.totalorder %s161, %s164
      %p173 = scmp.eq.s32.totalorder %s23, 3
      %p174 = por %p172, %p173
      %p175 = scmp.ne.s32.totalorder %s164, %s165
      %p176 = scmp.eq.s32.totalorder %s23, 0
      %p177 = por %p175, %p176
      %p178 = scmp.ne.s32.totalorder %s164, %s165
      %p179 = scmp.eq.s32.totalorder %s24, 3
      %p180 = por %p178, %p179
      %p182 = scmp.ne.s32.totalorder %s165, %s181
      %p183 = scmp.eq.s32.totalorder %s24, 0
      %p184 = por %p182, %p183
      %p185 = scmp.le.s32.totalorder 1, %s18
      %p186 = scmp.lt.s32.totalorder %s18, 5
      %p187 = pnand %p185, %p186
      %p188 = pneg %p187
      // Predicated region
      $region9: #{tpu_custom_call.1} parent=5 // pred_check
        _
      $region10: #{tpu_custom_call.1} parent=5 // pred_check_branch
        %190 = sbr.rel (%p187) target = $region12
      $region11: #{tpu_custom_call.1} parent=5 // pred_region
        %s191 = ssub.s32 %s18, 1
        // Predicated region
        $region13: #{tpu_custom_call.1} parent=11 // pred_check
          %p192 = pneg %p79
        $region14: #{tpu_custom_call.1} parent=11 // pred_check_branch
          %194 = sbr.rel (%p192) target = $region16
        $region15: #{tpu_custom_call.1} parent=11 // pred_region
          _
        $region16: #{tpu_custom_call.1} parent=11 // pred_fallthru
          _
        // Predicated region
        $region17: #{tpu_custom_call.1} parent=11 // pred_check
          %p195 = pneg %p100
        $region18: #{tpu_custom_call.1} parent=11 // pred_check_branch
          %197 = sbr.rel (%p195) target = $region20
        $region19: #{tpu_custom_call.1} parent=11 // pred_region
          _
        $region20: #{tpu_custom_call.1} parent=11 // pred_fallthru
          _
        // Predicated region
        $region21: #{tpu_custom_call.1} parent=11 // pred_check
          %p198 = pneg %p121
        $region22: #{tpu_custom_call.1} parent=11 // pred_check_branch
          %200 = sbr.rel (%p198) target = $region24
        $region23: #{tpu_custom_call.1} parent=11 // pred_region
          _
        $region24: #{tpu_custom_call.1} parent=11 // pred_fallthru
          _
      $region12: #{tpu_custom_call.1} parent=5 // pred_fallthru
        _
      %p201 = scmp.lt.s32.totalorder %s18, 4
      // Predicated region
      $region25: #{tpu_custom_call.1} parent=5 // pred_check
        %p202 = pneg %p201
      $region26: #{tpu_custom_call.1} parent=5 // pred_check_branch
        %204 = sbr.rel (%p202) target = $region28
      $region27: #{tpu_custom_call.1} parent=5 // pred_region
        // Predicated region
        $region29: #{tpu_custom_call.1} parent=27 // pred_check
          %p205 = pneg %p52
        $region30: #{tpu_custom_call.1} parent=27 // pred_check_branch
          %207 = sbr.rel (%p205) target = $region32
        $region31: #{tpu_custom_call.1} parent=27 // pred_region
          %p208 = scmp.lt.s32.totalorder %s25, 1
          %s209 = scalar_select %p208, %s25, 1
          %p210 = scmp.lt.s32.totalorder %s26, 1
          %s211 = scalar_select %p210, %s26, 1
          %s212 = smul.addr %s209, 2
          %s213 = sadd.s32 %s211, %s212
          %s214 = smul.addr %s213, 8
          %s215 = scalar_lea.vmem %s0, %s214
        $region32: #{tpu_custom_call.1} parent=27 // pred_fallthru
          _
      $region28: #{tpu_custom_call.1} parent=5 // pred_fallthru
        _
      %p216 = scmp.le.s32.totalorder 1, %s18
      %p217 = scmp.lt.s32.totalorder %s18, 5
      %p218 = pnand %p216, %p217
      %p219 = pneg %p218
      // Predicated region
      $region33: #{tpu_custom_call.1} parent=5 // pred_check
        _
      $region34: #{tpu_custom_call.1} parent=5 // pred_check_branch
        %221 = sbr.rel (%p218) target = $region36
      $region35: #{tpu_custom_call.1} parent=5 // pred_region
        %s222 = ssub.s32 %s18, 1
        %p223 = scmp.lt.s32.totalorder %s27, 1
        %s224 = scalar_select %p223, %s27, 1
        %p225 = scmp.lt.s32.totalorder %s28, 1
        %s226 = scalar_select %p225, %s28, 1
        %s227 = smul.addr %s224, 2
        %s228 = sadd.s32 %s226, %s227
        %s229 = smul.addr %s228, 8
        %s230 = scalar_lea.vmem %s0, %s229
        %p231 = pneg %p58
        %p232 = pneg %p55
        %p233 = pneg %p79
        %p234 = pneg %p76
        %p235 = pneg %p100
        %p236 = pneg %p97
        %p237 = pneg %p121
        %p238 = pneg %p118
        %p239 = pneg %p149
        %p240 = pneg %p146
        %s241 = sand.u32 %s136, 1
        %s242 = scalar_lea.sflag [#allocation3], %s241
        %s243 = sand.u32 %s136, 1
        %s244 = smul.addr %s243, 8
        %s245 = scalar_lea.vmem [#allocation2], %s244
        %p246 = pneg %p177
        %p247 = pneg %p174
        %s248 = sand.u32 %s164, 1
        %s249 = scalar_lea.sflag [#allocation5], %s248
        %s250 = sand.u32 %s164, 1
        %s251 = scalar_lea.vmem [#allocation4], %s250
        %p252 = scmp.lt.s32.totalorder %s27, 1
        %s253 = scalar_select %p252, %s27, 1
        %p254 = scmp.lt.s32.totalorder %s28, 1
        %s255 = scalar_select %p254, %s28, 1
        %s256 = smul.addr %s253, 2
        %s257 = sadd.s32 %s255, %s256
        %s258 = smul.addr %s257, 8
        %s259 = scalar_lea.vmem %s0, %s258
        %v260 = vld [vmem:[%s1] sm:$0xff]
        %v261 = vld [vmem:[%s1 + $0x8] sm:$0xff]
        %v262 = vld [vmem:[%s1 + $0x10] sm:$0xff]
        %v263 = vld [vmem:[%s1 + $0x18] sm:$0xff]
        %v264 = vld [vmem:[%s259] sm:$0xff]
        %v265 = vld [vmem:[%s3] sm:$0xff]
        %v266 = vld [vmem:[%s3 + $0x8] sm:$0xff]
        %v267 = vld [vmem:[%s3 + $0x10] sm:$0xff]
        %v268 = vld [vmem:[%s3 + $0x18] sm:$0xff]
        %270 = vset.pattern.permute.xlu0 0
        %271 = vperm.xlu0 %270, %v265
        %v272 = vpop.permute.xlu0 %271
        %275 = vset.pattern.permute.xlu0 0
        %276 = vperm.xlu0 %275, %v266
        %v277 = vpop.permute.xlu0 %276
        %280 = vset.pattern.permute.xlu0 0
        %281 = vperm.xlu0 %280, %v267
        %v282 = vpop.permute.xlu0 %281
        %285 = vset.pattern.permute.xlu0 0
        %286 = vperm.xlu0 %285, %v268
        %v287 = vpop.permute.xlu0 %286
        %vm289 = vcmask 64512
        %v291 = vsel %vm289, %v260, 0
        %v294 = vsel %vm289, %v261, 0
        %v297 = vsel %vm289, %v262, 0
        %v300 = vsel %vm289, %v263, 0
        %302 = vmatprep.subr.mxu0 0.0
        %303 = vmatpush1.msra.mxu0 %v264
        %304 = vmatprep.subr.mxu0 0.0
        %305 = vmatpush1.msra.mxu0 0.0
        %306 = vmatprep.subr.mxu0 0.0
        %307 = vmatpush1.msra.mxu0 0.0
        %308 = vmatprep.subr.mxu0 0.0
        %309 = vmatpush1.msra.mxu0 0.0
        %310 = vmatprep.subr.mxu0 0.0
        %311 = vmatpush1.msra.mxu0 0.0
        %312 = vmatprep.subr.mxu0 0.0
        %313 = vmatpush1.msra.mxu0 0.0
        %314 = vmatprep.subr.mxu0 0.0
        %315 = vmatpush1.msra.mxu0 0.0
        %316 = vmatprep.subr.mxu0 0.0
        %317 = vmatpush1.msra.mxu0 0.0
        %318 = vmatprep.subr.mxu0 0.0
        %319 = vmatpush1.msra.mxu0 0.0
        %320 = vmatprep.subr.mxu0 0.0
        %321 = vmatpush1.msra.mxu0 0.0
        %322 = vmatprep.subr.mxu0 0.0
        %323 = vmatpush1.msra.mxu0 0.0
        %324 = vmatprep.subr.mxu0 0.0
        %325 = vmatpush1.msra.mxu0 0.0
        %326 = vmatprep.subr.mxu0 0.0
        %327 = vmatpush1.msra.mxu0 0.0
        %328 = vmatprep.subr.mxu0 0.0
        %329 = vmatpush1.msra.mxu0 0.0
        %330 = vmatprep.subr.mxu0 0.0
        %331 = vmatpush1.msra.mxu0 0.0
        %332 = vmatprep.subr.mxu0 0.0
        %333 = vmatpush1.msra.mxu0 0.0
        %334 = vmatprep.subr.mxu0 0.0
        %335 = vmatpush1.msra.mxu0 0.0
        %336 = vmatprep.subr.mxu0 0.0
        %337 = vmatpush1.msra.mxu0 0.0
        %338 = vmatprep.subr.mxu0 0.0
        %339 = vmatpush1.msra.mxu0 0.0
        %340 = vmatprep.subr.mxu0 0.0
        %341 = vmatpush1.msra.mxu0 0.0
        %342 = vmatprep.subr.mxu0 0.0
        %343 = vmatpush1.msra.mxu0 0.0
        %344 = vmatprep.subr.mxu0 0.0
        %345 = vmatpush1.msra.mxu0 0.0
        %346 = vmatprep.subr.mxu0 0.0
        %347 = vmatpush1.msra.mxu0 0.0
        %348 = vmatprep.subr.mxu0 0.0
        %349 = vmatpush1.msra.mxu0 0.0
        %350 = vmatprep.subr.mxu0 0.0
        %351 = vmatpush1.msra.mxu0 0.0
        %352 = vmatprep.subr.mxu0 0.0
        %353 = vmatpush1.msra.mxu0 0.0
        %354 = vmatprep.subr.mxu0 0.0
        %355 = vmatpush1.msra.mxu0 0.0
        %356 = vmatprep.subr.mxu0 0.0
        %357 = vmatpush1.msra.mxu0 0.0
        %358 = vmatprep.subr.mxu0 0.0
        %359 = vmatpush1.msra.mxu0 0.0
        %360 = vmatprep.subr.mxu0 0.0
        %361 = vmatpush1.msra.mxu0 0.0
        %362 = vmatprep.subr.mxu0 0.0
        %363 = vmatpush1.msra.mxu0 0.0
        %364 = vmatprep.subr.mxu0 0.0
        %365 = vmatpush1.msra.mxu0 0.0
        %366 = vmatprep.mubr.f32.mxu0 0.0
        %367 = vmatmul.mubr.f32.gmra.mrb[0].mxu0 %v291
        %v368 = vpop.f32.mrb[0].mxu0
        %v369 = vadd.f32 %v272, %v368
        %v370 = vpop.f32.mrb[0].mxu0
        %371 = vmatprep.mubr.f32.mxu0 0.0
        %372 = vmatmul.mubr.f32.gmra.mrb[0].mxu0 %v294
        %v373 = vpop.f32.mrb[0].mxu0
        %v374 = vadd.f32 %v277, %v373
        %v375 = vpop.f32.mrb[0].mxu0
        %376 = vmatprep.mubr.f32.mxu0 0.0
        %377 = vmatmul.mubr.f32.gmra.mrb[0].mxu0 %v297
        %v378 = vpop.f32.mrb[0].mxu0
        %v379 = vadd.f32 %v282, %v378
        %v380 = vpop.f32.mrb[0].mxu0
        %381 = vmatprep.mubr.f32.mxu0 0.0
        %382 = vmatmul.mubr.f32.gmra.mrb[0].mxu0 %v300
        %v383 = vpop.f32.mrb[0].mxu0
        %v384 = vadd.f32 %v287, %v383
        %v385 = vpop.f32.mrb[0].mxu0
        %386 = vdwg.mxu0
        %v387 = vmin.f32 %v369, %v374
        %v388 = vmin.f32 %v379, %v384
        %v389 = vmin.f32 %v387, %v388
        %v390 = vrot.slane %v389, 4
        %v391 = vmin.f32 %v389, %v390
        %v392 = vrot.slane %v391, 2
        %v393 = vmin.f32 %v391, %v392
        %v394 = vrot.slane %v393, 1
        %v395 = vmin.f32 %v393, %v394
        %v396 = vlaneseq
        %v397 = vshrl.u32 %v396, 7
        %v398 = vadd.s32 %v397, 8
        %v399 = vadd.s32 %v397, 16
        %v400 = vadd.s32 %v397, 24
        %vm401 = vcmp.eq.f32.partialorder %v369, %v395
        %vm402 = vcmp.eq.f32.partialorder %v374, %v395
        %vm403 = vcmp.eq.f32.partialorder %v379, %v395
        %vm404 = vcmp.eq.f32.partialorder %v384, %v395
        %v405 = vsel %vm401, %v397, 32
        %v406 = vsel %vm402, %v398, 32
        %v407 = vsel %vm403, %v399, 32
        %v408 = vsel %vm404, %v400, 32
        %vm409 = vcmp.lt.s32.totalorder %v405, %v406
        %v410 = vsel %vm409, %v405, %v406
        %vm411 = vcmp.lt.s32.totalorder %v407, %v408
        %v412 = vsel %vm411, %v407, %v408
        %vm413 = vcmp.lt.s32.totalorder %v410, %v412
        %v414 = vsel %vm413, %v410, %v412
        %v415 = vrot.slane %v414, 4
        %vm416 = vcmp.lt.s32.totalorder %v414, %v415
        %v417 = vsel %vm416, %v414, %v415
        %v418 = vrot.slane %v417, 2
        %vm419 = vcmp.lt.s32.totalorder %v417, %v418
        %v420 = vsel %vm419, %v417, %v418
        %v421 = vrot.slane %v420, 1
        %vm422 = vcmp.lt.s32.totalorder %v420, %v421
        %v423 = vsel %vm422, %v420, %v421
        %vm424 = vcmp.eq.s32.totalorder %v397, %v423
        %vm425 = vcmp.eq.s32.totalorder %v398, %v423
        %vm426 = vcmp.eq.s32.totalorder %v399, %v423
        %vm427 = vcmp.eq.s32.totalorder %v400, %v423
        %v428 = vsel %vm424, 1, 0
        %v429 = vsel %vm425, 1, 0
        %v430 = vsel %vm426, 1, 0
        %v431 = vsel %vm427, 1, 0
        %v432 = vcvt.s32.f32 %v428
        %v433 = vcvt.s32.f32 %v429
        %v434 = vcvt.s32.f32 %v430
        %v435 = vcvt.s32.f32 %v431
        %v436 = vld [vmem:[%s2] sm:$0xff]
        %vm437 = vcmask 261120
        %v439 = vsel %vm437, %v436, 0
        %441 = vmatprep.subr.mxu0 0.0
        %442 = vmatpush1.msra.mxu0 %v432
        %443 = vmatprep.subr.mxu0 0.0
        %444 = vmatpush1.msra.mxu0 %v433
        %445 = vmatprep.subr.mxu0 0.0
        %446 = vmatpush1.msra.mxu0 %v434
        %447 = vmatprep.subr.mxu0 0.0
        %448 = vmatpush1.msra.mxu0 %v435
        %449 = vmatprep.subr.mxu0 0.0
        %450 = vmatpush1.msra.mxu0 0.0
        %451 = vmatprep.subr.mxu0 0.0
        %452 = vmatpush1.msra.mxu0 0.0
        %453 = vmatprep.subr.mxu0 0.0
        %454 = vmatpush1.msra.mxu0 0.0
        %455 = vmatprep.subr.mxu0 0.0
        %456 = vmatpush1.msra.mxu0 0.0
        %457 = vmatprep.subr.mxu0 0.0
        %458 = vmatpush1.msra.mxu0 0.0
        %459 = vmatprep.subr.mxu0 0.0
        %460 = vmatpush1.msra.mxu0 0.0
        %461 = vmatprep.subr.mxu0 0.0
        %462 = vmatpush1.msra.mxu0 0.0
        %463 = vmatprep.subr.mxu0 0.0
        %464 = vmatpush1.msra.mxu0 0.0
        %465 = vmatprep.subr.mxu0 0.0
        %466 = vmatpush1.msra.mxu0 0.0
        %467 = vmatprep.subr.mxu0 0.0
        %468 = vmatpush1.msra.mxu0 0.0
        %469 = vmatprep.subr.mxu0 0.0
        %470 = vmatpush1.msra.mxu0 0.0
        %471 = vmatprep.subr.mxu0 0.0
        %472 = vmatpush1.msra.mxu0 0.0
        %473 = vmatprep.subr.mxu0 0.0
        %474 = vmatpush1.msra.mxu0 0.0
        %475 = vmatprep.subr.mxu0 0.0
        %476 = vmatpush1.msra.mxu0 0.0
        %477 = vmatprep.subr.mxu0 0.0
        %478 = vmatpush1.msra.mxu0 0.0
        %479 = vmatprep.subr.mxu0 0.0
        %480 = vmatpush1.msra.mxu0 0.0
        %481 = vmatprep.subr.mxu0 0.0
        %482 = vmatpush1.msra.mxu0 0.0
        %483 = vmatprep.subr.mxu0 0.0
        %484 = vmatpush1.msra.mxu0 0.0
        %485 = vmatprep.subr.mxu0 0.0
        %486 = vmatpush1.msra.mxu0 0.0
        %487 = vmatprep.subr.mxu0 0.0
        %488 = vmatpush1.msra.mxu0 0.0
        %489 = vmatprep.subr.mxu0 0.0
        %490 = vmatpush1.msra.mxu0 0.0
        %491 = vmatprep.subr.mxu0 0.0
        %492 = vmatpush1.msra.mxu0 0.0
        %493 = vmatprep.subr.mxu0 0.0
        %494 = vmatpush1.msra.mxu0 0.0
        %495 = vmatprep.subr.mxu0 0.0
        %496 = vmatpush1.msra.mxu0 0.0
        %497 = vmatprep.subr.mxu0 0.0
        %498 = vmatpush1.msra.mxu0 0.0
        %499 = vmatprep.subr.mxu0 0.0
        %500 = vmatpush1.msra.mxu0 0.0
        %501 = vmatprep.subr.mxu0 0.0
        %502 = vmatpush1.msra.mxu0 0.0
        %503 = vmatprep.subr.mxu0 0.0
        %504 = vmatpush1.msra.mxu0 0.0
        %505 = vmatprep.mubr.f32.mxu0 0.0
        %506 = vmatmul.mubr.f32.gmra.mrb[0].mxu0 %v439
        %v507 = vpop.f32.mrb[0].mxu0
        %v508 = vadd.f32 0.0, %v507
        %v509 = vpop.f32.mrb[0].mxu0
        %510 = vdwg.mxu0
        %511 = vst [vmem:[%s245] sm:$0xff] %v508
        %512 = vst [vmem:[%s251] sm:$0x1] %v423
        %s513 = sand.u32 %s136, 1
        %s514 = scalar_lea.sflag [#allocation3], %s513
        %s515 = sand.u32 %s136, 1
        %s516 = smul.addr %s515, 8
        %s517 = scalar_lea.vmem [#allocation2], %s516
        %s518 = sand.u32 %s164, 1
        %s519 = scalar_lea.sflag [#allocation5], %s518
        %s520 = sand.u32 %s164, 1
        %s521 = scalar_lea.vmem [#allocation4], %s520
        // Predicated region
        $region37: #{tpu_custom_call.1} parent=35 // pred_check
          %p522 = pneg %p146
        $region38: #{tpu_custom_call.1} parent=35 // pred_check_branch
          %524 = sbr.rel (%p522) target = $region40
        $region39: #{tpu_custom_call.1} parent=35 // pred_region
          %s526 = ssub.s32 128, 128
          %527 = vsyncadd %s514, %s526
          %s528 = smul.addr %s27, 2
          %s529 = sadd.s32 %s28, %s528
          %s530 = smul.addr %s529, 128
          %s531 = scalar_lea.hbm %s4, %s530
          %s533 = sshll.u32 %s517, 4
          %s534 = int_to_ptr.vmem [resolvable:$true] %s533
          %536 = dma.vmem_to_hbm [thread:$0]  %s534, 128, %s531, %s514
        $region40: #{tpu_custom_call.1} parent=35 // pred_fallthru
          _
        // Predicated region
        $region41: #{tpu_custom_call.1} parent=35 // pred_check
          %p537 = pneg %p174
        $region42: #{tpu_custom_call.1} parent=35 // pred_check_branch
          %539 = sbr.rel (%p537) target = $region44
        $region43: #{tpu_custom_call.1} parent=35 // pred_region
          %s541 = ssub.s32 16, 16
          %542 = vsyncadd %s519, %s541
          %s543 = smul.addr %s27, 2
          %s544 = sadd.s32 %s28, %s543
          %s545 = smul.addr %s544, 16
          %s546 = scalar_lea.hbm %s5, %s545
          %s548 = sshll.u32 %s521, 4
          %s549 = int_to_ptr.vmem [resolvable:$true] %s548
          %551 = dma.vmem_to_hbm [thread:$0]  %s549, 16, %s546, %s519
        $region44: #{tpu_custom_call.1} parent=35 // pred_fallthru
          _
      $region36: #{tpu_custom_call.1} parent=5 // pred_fallthru
        _
      %p552 = scmp.le.s32.totalorder 2, %s18
      // Predicated region
      $region45: #{tpu_custom_call.1} parent=5 // pred_check
        %p553 = pneg %p552
      $region46: #{tpu_custom_call.1} parent=5 // pred_check_branch
        %555 = sbr.rel (%p553) target = $region48
      $region47: #{tpu_custom_call.1} parent=5 // pred_region
        %s556 = ssub.s32 %s18, 2
        // Predicated region
        $region49: #{tpu_custom_call.1} parent=47 // pred_check
          %p557 = pneg %p152
        $region50: #{tpu_custom_call.1} parent=47 // pred_check_branch
          %559 = sbr.rel (%p557) target = $region52
        $region51: #{tpu_custom_call.1} parent=47 // pred_region
          %s560 = sand.u32 %s137, 1
          %s561 = scalar_lea.sflag [#allocation3], %s560
          %s562 = sand.u32 %s137, 1
          %s563 = smul.addr %s562, 8
          %s564 = scalar_lea.vmem [#allocation2], %s563
          %565 = dma.done %s561, 128
        $region52: #{tpu_custom_call.1} parent=47 // pred_fallthru
          _
        // Predicated region
        $region53: #{tpu_custom_call.1} parent=47 // pred_check
          %p566 = pneg %p180
        $region54: #{tpu_custom_call.1} parent=47 // pred_check_branch
          %568 = sbr.rel (%p566) target = $region56
        $region55: #{tpu_custom_call.1} parent=47 // pred_region
          %s569 = sand.u32 %s165, 1
          %s570 = scalar_lea.sflag [#allocation5], %s569
          %s571 = sand.u32 %s165, 1
          %s572 = scalar_lea.vmem [#allocation4], %s571
          %573 = dma.done %s570, 16
        $region56: #{tpu_custom_call.1} parent=47 // pred_fallthru
          _
      $region48: #{tpu_custom_call.1} parent=5 // pred_fallthru
        _
    $region6: #{tpu_custom_call.1} parent=1 // loop_footer
      %s22 = sadd.s32 1, %s18
    $region7: #{tpu_custom_call.1} parent=1 // loop_footer_branch
      %17 = sbr.rel target = $region3
    $region8: #{tpu_custom_call.1} parent=1 // loop_exit
      _
    %574 = vsyncpa [#allocation3], 1
    %s575 = scalar_lea.sflag [#allocation3], 1
    %576 = vsyncpa %s575, 1
    %577 = vsyncpa [#allocation5], 1
    %s578 = scalar_lea.sflag [#allocation5], 1
    %579 = vsyncpa %s578, 1

</llo_original>
